<compile_context>
chip_gen: v6e
topology: v6e:2x2x1
jax: 0.10.0
libtpu: 0.0.40
codegen_flags: <defaults>
</compile_context>

<pallas_src>
import functools
import math

import jax
import jax.numpy as jnp
from jax import lax
from jax.experimental import pallas as pl
from jax.experimental.pallas import tpu as pltpu


def _round_up(x, m):
    return ((x + m - 1) // m) * m


# ---------------------------------------------------------------------------
# Generation-aware tiling parameters
# ---------------------------------------------------------------------------
def _chip_generation():
    try:
        kind = jax.devices()[0].device_kind.lower()
    except Exception:
        return 0
    for g in (7, 6, 5, 4):
        if "v%d" % g in kind:
            return g
    return 0


def _fused_tile_params():
    gen = _chip_generation()
    if gen >= 7:
        # v7x: 64 MiB VMEM per TC, 2 TCs -> conservative tiles, even grid >= 4.
        return 512, True, 48 * 1024 * 1024
    if gen in (5, 6):
        # v5e/v6e: 128 MiB VMEM, single TC -> big blocks, few grid steps.
        return 1024, False, 64 * 1024 * 1024
    return 512, False, 32 * 1024 * 1024


def _pick_block_n(n, t_pad, *, target_rows, prefer_even_grid):
    """Samples per block: nb | N and nb % 8 == 0 (or nb == N) for block rules."""
    valid = [nb for nb in range(1, n + 1)
             if n % nb == 0 and (nb % 8 == 0 or nb == n)]

    def key(nb):
        rows = nb * t_pad
        steps = n // nb
        fits = rows <= target_rows
        nice = (steps % 2 == 0 and steps >= 4) if prefer_even_grid else True
        return (fits, nice, rows if fits else -rows)

    return max(valid, key=key)


def _pick_rows(n, width, max_block_bytes=4 * 1024 * 1024):
    """Row block for the elementwise BN+tanh kernel, bounded independent of N."""
    cap = max(8, max_block_bytes // (width * 4))
    valid = [r for r in range(1, n + 1)
             if n % r == 0 and (r % 8 == 0 or r == n)]
    fit = [r for r in valid if r <= cap]
    return max(fit) if fit else min(valid)


# ---------------------------------------------------------------------------
# Fused im2col-conv + bias + ReLU + streaming k-max kernel (+ partial BN stats)
# ---------------------------------------------------------------------------
def _fused_conv_kmax_kernel(x_ref, w_ref, b_ref, vl_ref, out_ref, stats_ref, *,
                            nb, t_pad, emb_dim, max_ks, n_steps, cpad, kmax):
    # --- im2col LHS: lhs[r, j*E:(j+1)*E] = x[r + j, :] (zeros past the block).
    # Row r = sample*t_pad + t; cross-sample bleed only reaches time positions
    # that are masked as invalid below, so it never affects the result.
    x = x_ref[...]                                        # (nb*t_pad, E) bf16
    taps = [x]
    for j in range(1, max_ks):
        taps.append(jnp.concatenate(
            [x[j:, :], jnp.zeros((j, emb_dim), x.dtype)], axis=0))
    lhs = jnp.concatenate(taps, axis=-1)                  # (nb*t_pad, max_ks*E)

    # --- single MXU contraction for every kernel size / tap / channel
    # (weight columns of smaller kernel sizes are zero-padded rows).
    y = jnp.dot(lhs, w_ref[...], preferred_element_type=jnp.float32)
    y = y.reshape(nb, t_pad, cpad)                        # trivial: t_pad % 8 == 0

    # Hoisted broadcasts (JAX does not CSE broadcast_in_dim inside the loop).
    bias = jnp.broadcast_to(b_ref[...], (nb, cpad))
    vlen = jnp.broadcast_to(vl_ref[...], (nb, cpad))

    # --- streaming top-k over time: y is traversed once; kmax running
    # (value, index) pairs live in vregs and are updated with an insertion
    # compare-select network per step.  Invalid time steps (per column) get
    # the -1 sentinel; ReLU outputs are >= 0 so sentinels never win, and every
    # real column has >= kmax valid steps (asserted in the wrapper).
    top_v = [jnp.full((nb, cpad), -1.0, jnp.float32) for _ in range(kmax)]
    top_i = [jnp.full((nb, cpad), float(t_pad), jnp.float32) for _ in range(kmax)]
    for t in range(n_steps):
        yt = y[:, t, :]                                   # (nb, cpad)
        v = jnp.where(vlen > float(t), jnp.maximum(yt + bias, 0.0), -1.0)
        i = jnp.full((nb, cpad), float(t), jnp.float32)
        for k in range(kmax):
            take = v > top_v[k]                           # strict > keeps earliest tie
            keep_v, keep_i = top_v[k], top_i[k]
            top_v[k] = jnp.where(take, v, keep_v)
            top_i[k] = jnp.where(take, i, keep_i)
            if k + 1 < kmax:                              # displaced entry trickles down
                v = jnp.where(take, keep_v, v)
                i = jnp.where(take, keep_i, i)
    # TODO(synk): for very long sequences the unrolled time loop should become
    # a lax.fori_loop over a VMEM scratch to bound trace size.

    # --- restore temporal order with a tiny compare-swap network (pure VPU).
    for end in range(kmax - 1, 0, -1):
        for a in range(end):
            swap = top_i[a] > top_i[a + 1]
            va, vb = top_v[a], top_v[a + 1]
            ia, ib = top_i[a], top_i[a + 1]
            top_v[a] = jnp.where(swap, vb, va)
            top_v[a + 1] = jnp.where(swap, va, vb)
            top_i[a] = jnp.where(swap, ib, ia)
            top_i[a + 1] = jnp.where(swap, ia, ib)

    # --- k-major, lane-dense store: out[:, k*cpad + col] = k-th (in time) value.
    for k in range(kmax):
        out_ref[:, k * cpad:(k + 1) * cpad] = top_v[k]

    # --- per-block partial BatchNorm statistics (row 0: sum, row 1: sum of sq).
    out_w = kmax * cpad
    s1 = jnp.concatenate(
        [jnp.sum(v, axis=0, keepdims=True) for v in top_v], axis=-1)
    s2 = jnp.concatenate(
        [jnp.sum(v * v, axis=0, keepdims=True) for v in top_v], axis=-1)
    stats_ref[...] = jnp.concatenate(
        [s1, s2, jnp.zeros((6, out_w), jnp.float32)], axis=0)


def fused_conv_relu_kmax(emb, conv_w, conv_b, kernel_sizes, kmax):
    """emb: (N, T, E) f32; conv_w[i]: (C, ks_i, E); conv_b[i]: (C,).

    Returns (feats, stats, ctot, cpad) where feats is (N, kmax*cpad) f32 in
    k-major padded layout (column k*cpad + (g*C + c)) and stats holds per-block
    partial sums / sums-of-squares for BatchNorm."""
    N, T, E = emb.shape
    C = conv_w[0].shape[0]
    G = len(kernel_sizes)
    max_ks = max(kernel_sizes)
    min_ks = min(kernel_sizes)
    assert kmax <= T - max_ks + 1, "kmax must not exceed the smallest conv output length"

    ctot = G * C
    cpad = _round_up(ctot, 128)          # lane-dense columns everywhere
    out_w = kmax * cpad
    k_dim = max_ks * E
    n_steps = T - min_ks + 1             # longest conv output length

    # im2col weight: w_all[j*E + e, g*C + c] = conv_w[g][c, j, e]
    # (zero for j >= ks_g and for padded columns).  No kmax replication.
    cols = []
    for ks, w in zip(kernel_sizes, conv_w):
        wt = jnp.transpose(w, (1, 2, 0)).reshape(ks * E, C)        # (ks*E, C)
        if ks < max_ks:
            wt = jnp.concatenate(
                [wt, jnp.zeros(((max_ks - ks) * E, C), jnp.float32)], axis=0)
        cols.append(wt)
    w_all = jnp.concatenate(cols, axis=1)                          # (k_dim, ctot)
    if cpad > ctot:
        w_all = jnp.concatenate(
            [w_all, jnp.zeros((k_dim, cpad - ctot), jnp.float32)], axis=1)
    w_all = w_all.astype(jnp.bfloat16)

    b_all = jnp.concatenate(conv_b)                                # (ctot,)
    b_all = jnp.pad(b_all, (0, cpad - ctot))[None, :].astype(jnp.float32)

    # Per-column valid output length (pad columns: 0 -> always masked).
    vlen = jnp.concatenate(
        [jnp.full((C,), float(T - ks + 1), jnp.float32) for ks in kernel_sizes])
    vlen = jnp.pad(vlen, (0, cpad - ctot))[None, :]

    # Pad time to a sublane multiple; cast to bf16 in the wrapper (halves the
    # HBM input traffic and the x double buffer).
    t_pad = _round_up(T, 8)
    if t_pad != T:
        emb = jnp.concatenate(
            [emb, jnp.zeros((N, t_pad - T, E), emb.dtype)], axis=1)
    x2d = emb.reshape(N * t_pad, E).astype(jnp.bfloat16)

    target_rows, prefer_even, vmem_bytes = _fused_tile_params()
    nb = _pick_block_n(N, t_pad, target_rows=target_rows,
                       prefer_even_grid=prefer_even)
    nblk = N // nb

    kernel = functools.partial(
        _fused_conv_kmax_kernel, nb=nb, t_pad=t_pad, emb_dim=E, max_ks=max_ks,
        n_steps=n_steps, cpad=cpad, kmax=kmax)

    feats, stats = pl.pallas_call(
        kernel,
        out_shape=(jax.ShapeDtypeStruct((N, out_w), jnp.float32),
                   jax.ShapeDtypeStruct((nblk * 8, out_w), jnp.float32)),
        grid=(nblk,),
        in_specs=[
            pl.BlockSpec((nb * t_pad, E), lambda n: (n, 0)),
            pl.BlockSpec((k_dim, cpad), lambda n: (0, 0)),
            pl.BlockSpec((1, cpad), lambda n: (0, 0)),
            pl.BlockSpec((1, cpad), lambda n: (0, 0)),
        ],
        out_specs=(pl.BlockSpec((nb, out_w), lambda n: (n, 0)),
                   pl.BlockSpec((8, out_w), lambda n: (n, 0))),
        compiler_params=pltpu.CompilerParams(
            dimension_semantics=("parallel",),
            vmem_limit_bytes=vmem_bytes),
    )(x2d, w_all, b_all, vlen)
    return feats, stats, ctot, cpad


# ---------------------------------------------------------------------------
# BatchNorm1d (training-mode batch stats) + tanh on the k-major feature slab.
# Statistics come from the fused kernel's partial sums; the normalize+tanh
# kernel is row-tiled so its VMEM footprint is bounded independent of N.
# ---------------------------------------------------------------------------
def _affine_tanh_kernel(x_ref, s_ref, t_ref, o_ref):
    o_ref[...] = jnp.tanh(x_ref[...] * s_ref[...] + t_ref[...])


def batchnorm_tanh_kmajor(feats, stats, gamma_km, beta_km, n_rows, eps=1e-5):
    N, W = feats.shape
    st = stats.reshape(-1, 8, W)
    total = jnp.sum(st[:, 0, :], axis=0)
    total_sq = jnp.sum(st[:, 1, :], axis=0)
    mean = total / n_rows
    # TODO(synk): one-pass variance can cancel when |mean| >> std; switch to a
    # Welford merge of the per-block stats if tight torch agreement is needed.
    var = jnp.maximum(total_sq / n_rows - mean * mean, 0.0)
    inv = lax.rsqrt(var + eps)
    scale = (gamma_km * inv)[None, :]                     # (1, W)
    shift = (beta_km - mean * gamma_km * inv)[None, :]    # (1, W)

    nb = _pick_rows(N, W)
    return pl.pallas_call(
        _affine_tanh_kernel,
        out_shape=jax.ShapeDtypeStruct((N, W), jnp.float32),
        grid=(N // nb,),
        in_specs=[pl.BlockSpec((nb, W), lambda i: (i, 0)),
                  pl.BlockSpec((1, W), lambda i: (0, 0)),
                  pl.BlockSpec((1, W), lambda i: (0, 0))],
        out_specs=pl.BlockSpec((nb, W), lambda i: (i, 0)),
        compiler_params=pltpu.CompilerParams(
            dimension_semantics=("parallel",),
            vmem_limit_bytes=32 * 1024 * 1024),
    )(feats, scale, shift)


# ---------------------------------------------------------------------------
# Layout plumbing (tiny wrapper-side reshapes, as recommended)
# ---------------------------------------------------------------------------
def _to_kmajor(v, ctot, cpad, kmax, pad_value):
    # v: (1, F) with col = q*kmax + k  ->  (kmax*cpad,) with pos = k*cpad + q
    vk = jnp.transpose(v.reshape(ctot, kmax))             # (kmax, ctot)
    vk = jnp.pad(vk, ((0, 0), (0, cpad - ctot)), constant_values=pad_value)
    return vk.reshape(kmax * cpad)


def _from_kmajor(y, ctot, cpad, kmax):
    n = y.shape[0]
    y = y.reshape(n, kmax, cpad)[:, :, :ctot]             # (N, kmax, ctot)
    return jnp.transpose(y, (0, 2, 1)).reshape(n, ctot * kmax)


# ---------------------------------------------------------------------------
# Parameter init (matches a freshly constructed torch module) and forward
# ---------------------------------------------------------------------------
def init_params(key, vocab_size, embedding_size, kernel_sizes, kernel_num, kmax):
    keys = jax.random.split(key, 2 * len(kernel_sizes) + 1)
    # Embedding: xavier_normal with gain sqrt(2) (module's _weights_init).
    std = math.sqrt(2.0) * math.sqrt(2.0 / (vocab_size + embedding_size))
    embedding = std * jax.random.normal(
        keys[0], (vocab_size, embedding_size), jnp.float32)
    conv_w, conv_b = [], []
    for i, ks in enumerate(kernel_sizes):
        fan_in = 1 * ks * embedding_size
        bound = 1.0 / math.sqrt(fan_in)
        # torch Conv2d weight (C, 1, ks, E) with the singleton channel dropped.
        w = jax.random.uniform(keys[2 * i + 1], (kernel_num, ks, embedding_size),
                               jnp.float32, -bound, bound)
        b = jax.random.uniform(keys[2 * i + 2], (kernel_num,),
                               jnp.float32, -bound, bound)
        conv_w.append(w)
        conv_b.append(b)
    out_size = kernel_num * len(kernel_sizes) * kmax
    return {
        "embedding": embedding,
        "conv_w": conv_w,
        "conv_b": conv_b,
        "gamma": jnp.ones((1, out_size), jnp.float32),
        "beta": jnp.zeros((1, out_size), jnp.float32),
    }


def kmax_conv_encoder_forward(params, inputs, kernel_sizes, kmax):
    # Embedding lookup (gather) is glue, done in plain JAX.
    emb = params["embedding"][inputs]                           # (N, T, E)
    feats, stats, ctot, cpad = fused_conv_relu_kmax(
        emb, params["conv_w"], params["conv_b"], kernel_sizes, kmax)
    gamma_km = _to_kmajor(params["gamma"], ctot, cpad, kmax, 1.0)
    beta_km = _to_kmajor(params["beta"], ctot, cpad, kmax, 0.0)
    # TODO(synk): BatchNorm running-stat buffers are not tracked; training-mode
    # batch statistics are used (matches a freshly constructed nn.BatchNorm1d).
    y = batchnorm_tanh_kmajor(feats, stats, gamma_km, beta_km,
                              n_rows=inputs.shape[0])
    return _from_kmajor(y, ctot, cpad, kmax)                    # (N, F)


if __name__ == "__main__":
    vocab_size, embedding_size = 50, 32
    kernel_sizes = (2, 3, 4)
    kernel_num = 8
    kmax = 3
    N, T = 2, 8

    key = jax.random.PRNGKey(0)
    k_param, k_in = jax.random.split(key)
    params = init_params(k_param, vocab_size, embedding_size,
                         kernel_sizes, kernel_num, kmax)
    inputs = jax.random.randint(k_in, (N, T), 0, vocab_size)

    out = kmax_conv_encoder_forward(params, inputs, kernel_sizes, kmax)
    out = jax.block_until_ready(out)
    assert out.shape == (N, kernel_num * len(kernel_sizes) * kmax)
    assert bool(jnp.all(jnp.isfinite(out)))
    print("KERNEL_OK")
</pallas_src>

<mosaic_0001>
module attributes {stable_mosaic.version = 11 : i64} {
  func.func @_fused_conv_kmax_kernel(%arg0: i32, %arg1: memref<16x32xbf16, #tpu.memory_space<vmem>>, %arg2: memref<128x128xbf16, #tpu.memory_space<vmem>>, %arg3: memref<1x128xf32, #tpu.memory_space<vmem>>, %arg4: memref<1x128xf32, #tpu.memory_space<vmem>>, %arg5: memref<2x384xf32, #tpu.memory_space<vmem>>, %arg6: memref<8x384xf32, #tpu.memory_space<vmem>>) attributes {dimension_semantics = [#tpu.dimension_semantics<parallel>], iteration_bounds = array<i64: 1>, scalar_prefetch = 0 : i64, scratch_operands = 0 : i64, tpu.core_type = #tpu.core_type<tc>, window_params = [{transform_indices = @transform_0, window_bounds = array<i64: 16, 32>}, {pipeline_mode = #tpu.pipeline_mode<synchronous>, transform_indices = @transform_1, window_bounds = array<i64: 128, 128>}, {pipeline_mode = #tpu.pipeline_mode<synchronous>, transform_indices = @transform_2, window_bounds = array<i64: 1, 128>}, {pipeline_mode = #tpu.pipeline_mode<synchronous>, transform_indices = @transform_3, window_bounds = array<i64: 1, 128>}, {transform_indices = @transform_4, window_bounds = array<i64: 2, 384>}, {transform_indices = @transform_5, window_bounds = array<i64: 8, 384>}]} {
    %c0 = arith.constant 0 : index
    %c0_0 = arith.constant 0 : index
    %0 = vector.load %arg1[%c0, %c0_0] : memref<16x32xbf16, #tpu.memory_space<vmem>>, vector<16x32xbf16>
    %1 = vector.extract_strided_slice %0 {offsets = [1, 0], sizes = [15, 32], strides = [1, 1]} : vector<16x32xbf16> to vector<15x32xbf16>
    %cst = arith.constant 0.000000e+00 : bf16
    %2 = vector.broadcast %cst : bf16 to vector<1x32xbf16>
    %3 = tpu.concatenate %1, %2 in 0 : vector<15x32xbf16>, vector<1x32xbf16> -> vector<16x32xbf16>
    %4 = vector.extract_strided_slice %0 {offsets = [2, 0], sizes = [14, 32], strides = [1, 1]} : vector<16x32xbf16> to vector<14x32xbf16>
    %cst_1 = arith.constant 0.000000e+00 : bf16
    %5 = vector.broadcast %cst_1 : bf16 to vector<2x32xbf16>
    %6 = tpu.concatenate %4, %5 in 0 : vector<14x32xbf16>, vector<2x32xbf16> -> vector<16x32xbf16>
    %7 = vector.extract_strided_slice %0 {offsets = [3, 0], sizes = [13, 32], strides = [1, 1]} : vector<16x32xbf16> to vector<13x32xbf16>
    %cst_2 = arith.constant 0.000000e+00 : bf16
    %8 = vector.broadcast %cst_2 : bf16 to vector<3x32xbf16>
    %9 = tpu.concatenate %7, %8 in 0 : vector<13x32xbf16>, vector<3x32xbf16> -> vector<16x32xbf16>
    %10 = tpu.concatenate %0, %3, %6, %9 in 1 : vector<16x32xbf16>, vector<16x32xbf16>, vector<16x32xbf16>, vector<16x32xbf16> -> vector<16x128xbf16>
    %c0_3 = arith.constant 0 : index
    %c0_4 = arith.constant 0 : index
    %11 = vector.load %arg2[%c0_3, %c0_4] : memref<128x128xbf16, #tpu.memory_space<vmem>>, vector<128x128xbf16>
    %cst_5 = arith.constant dense<0.000000e+00> : vector<16x128xf32>
    %12 = tpu.matmul %10, %11, %cst_5 {dimension_numbers = #tpu.dot_dimension_numbers<[1], [0], [0], [1], [0, 0, 1, 1], [], []>} : vector<16x128xbf16>, vector<128x128xbf16>, vector<16x128xf32> -> vector<16x128xf32>
    %13 = vector.shape_cast %12 : vector<16x128xf32> to vector<2x8x128xf32>
    %c0_6 = arith.constant 0 : index
    %c0_7 = arith.constant 0 : index
    %14 = vector.load %arg3[%c0_6, %c0_7] : memref<1x128xf32, #tpu.memory_space<vmem>>, vector<1x128xf32>
    %15 = vector.shape_cast %14 : vector<1x128xf32> to vector<1x128xf32>
    %16 = vector.broadcast %15 : vector<1x128xf32> to vector<2x128xf32>
    %c0_8 = arith.constant 0 : index
    %c0_9 = arith.constant 0 : index
    %17 = vector.load %arg4[%c0_8, %c0_9] : memref<1x128xf32, #tpu.memory_space<vmem>>, vector<1x128xf32>
    %18 = vector.shape_cast %17 : vector<1x128xf32> to vector<1x128xf32>
    %19 = vector.broadcast %18 : vector<1x128xf32> to vector<2x128xf32>
    %cst_10 = arith.constant -1.000000e+00 : f32
    %20 = vector.broadcast %cst_10 : f32 to vector<2x128xf32>
    %cst_11 = arith.constant -1.000000e+00 : f32
    %21 = vector.broadcast %cst_11 : f32 to vector<2x128xf32>
    %cst_12 = arith.constant -1.000000e+00 : f32
    %22 = vector.broadcast %cst_12 : f32 to vector<2x128xf32>
    %cst_13 = arith.constant 8.000000e+00 : f32
    %23 = vector.broadcast %cst_13 : f32 to vector<2x128xf32>
    %cst_14 = arith.constant 8.000000e+00 : f32
    %24 = vector.broadcast %cst_14 : f32 to vector<2x128xf32>
    %cst_15 = arith.constant 8.000000e+00 : f32
    %25 = vector.broadcast %cst_15 : f32 to vector<2x128xf32>
    %26 = vector.extract_strided_slice %13 {offsets = [0, 0, 0], sizes = [2, 1, 128], strides = [1, 1, 1]} : vector<2x8x128xf32> to vector<2x1x128xf32>
    %27 = vector.shape_cast %26 : vector<2x1x128xf32> to vector<2x128xf32>
    %cst_16 = arith.constant 0.000000e+00 : f32
    %28 = vector.broadcast %cst_16 : f32 to vector<2x128xf32>
    %29 = arith.cmpf ogt, %19, %28 : vector<2x128xf32>
    %30 = arith.addf %27, %16 : vector<2x128xf32>
    %cst_17 = arith.constant 0.000000e+00 : f32
    %31 = vector.broadcast %cst_17 : f32 to vector<2x128xf32>
    %32 = arith.maximumf %30, %31 : vector<2x128xf32>
    %cst_18 = arith.constant -1.000000e+00 : f32
    %33 = vector.broadcast %cst_18 : f32 to vector<2x128xf32>
    %34 = arith.select %29, %32, %33 : vector<2x128xi1>, vector<2x128xf32>
    %cst_19 = arith.constant 0.000000e+00 : f32
    %35 = vector.broadcast %cst_19 : f32 to vector<2x128xf32>
    %36 = arith.cmpf ogt, %34, %20 : vector<2x128xf32>
    %37 = arith.select %36, %34, %20 : vector<2x128xi1>, vector<2x128xf32>
    %38 = arith.select %36, %35, %23 : vector<2x128xi1>, vector<2x128xf32>
    %39 = arith.select %36, %20, %34 : vector<2x128xi1>, vector<2x128xf32>
    %40 = arith.select %36, %23, %35 : vector<2x128xi1>, vector<2x128xf32>
    %41 = arith.cmpf ogt, %39, %21 : vector<2x128xf32>
    %42 = arith.select %41, %39, %21 : vector<2x128xi1>, vector<2x128xf32>
    %43 = arith.select %41, %40, %24 : vector<2x128xi1>, vector<2x128xf32>
    %44 = arith.select %41, %21, %39 : vector<2x128xi1>, vector<2x128xf32>
    %45 = arith.select %41, %24, %40 : vector<2x128xi1>, vector<2x128xf32>
    %46 = arith.cmpf ogt, %44, %22 : vector<2x128xf32>
    %47 = arith.select %46, %44, %22 : vector<2x128xi1>, vector<2x128xf32>
    %48 = arith.select %46, %45, %25 : vector<2x128xi1>, vector<2x128xf32>
    %49 = vector.extract_strided_slice %13 {offsets = [0, 1, 0], sizes = [2, 1, 128], strides = [1, 1, 1]} : vector<2x8x128xf32> to vector<2x1x128xf32>
    %50 = vector.shape_cast %49 : vector<2x1x128xf32> to vector<2x128xf32>
    %cst_20 = arith.constant 1.000000e+00 : f32
    %51 = vector.broadcast %cst_20 : f32 to vector<2x128xf32>
    %52 = arith.cmpf ogt, %19, %51 : vector<2x128xf32>
    %53 = arith.addf %50, %16 : vector<2x128xf32>
    %cst_21 = arith.constant 0.000000e+00 : f32
    %54 = vector.broadcast %cst_21 : f32 to vector<2x128xf32>
    %55 = arith.maximumf %53, %54 : vector<2x128xf32>
    %cst_22 = arith.constant -1.000000e+00 : f32
    %56 = vector.broadcast %cst_22 : f32 to vector<2x128xf32>
    %57 = arith.select %52, %55, %56 : vector<2x128xi1>, vector<2x128xf32>
    %cst_23 = arith.constant 1.000000e+00 : f32
    %58 = vector.broadcast %cst_23 : f32 to vector<2x128xf32>
    %59 = arith.cmpf ogt, %57, %37 : vector<2x128xf32>
    %60 = arith.select %59, %57, %37 : vector<2x128xi1>, vector<2x128xf32>
    %61 = arith.select %59, %58, %38 : vector<2x128xi1>, vector<2x128xf32>
    %62 = arith.select %59, %37, %57 : vector<2x128xi1>, vector<2x128xf32>
    %63 = arith.select %59, %38, %58 : vector<2x128xi1>, vector<2x128xf32>
    %64 = arith.cmpf ogt, %62, %42 : vector<2x128xf32>
    %65 = arith.select %64, %62, %42 : vector<2x128xi1>, vector<2x128xf32>
    %66 = arith.select %64, %63, %43 : vector<2x128xi1>, vector<2x128xf32>
    %67 = arith.select %64, %42, %62 : vector<2x128xi1>, vector<2x128xf32>
    %68 = arith.select %64, %43, %63 : vector<2x128xi1>, vector<2x128xf32>
    %69 = arith.cmpf ogt, %67, %47 : vector<2x128xf32>
    %70 = arith.select %69, %67, %47 : vector<2x128xi1>, vector<2x128xf32>
    %71 = arith.select %69, %68, %48 : vector<2x128xi1>, vector<2x128xf32>
    %72 = vector.extract_strided_slice %13 {offsets = [0, 2, 0], sizes = [2, 1, 128], strides = [1, 1, 1]} : vector<2x8x128xf32> to vector<2x1x128xf32>
    %73 = vector.shape_cast %72 : vector<2x1x128xf32> to vector<2x128xf32>
    %cst_24 = arith.constant 2.000000e+00 : f32
    %74 = vector.broadcast %cst_24 : f32 to vector<2x128xf32>
    %75 = arith.cmpf ogt, %19, %74 : vector<2x128xf32>
    %76 = arith.addf %73, %16 : vector<2x128xf32>
    %cst_25 = arith.constant 0.000000e+00 : f32
    %77 = vector.broadcast %cst_25 : f32 to vector<2x128xf32>
    %78 = arith.maximumf %76, %77 : vector<2x128xf32>
    %cst_26 = arith.constant -1.000000e+00 : f32
    %79 = vector.broadcast %cst_26 : f32 to vector<2x128xf32>
    %80 = arith.select %75, %78, %79 : vector<2x128xi1>, vector<2x128xf32>
    %cst_27 = arith.constant 2.000000e+00 : f32
    %81 = vector.broadcast %cst_27 : f32 to vector<2x128xf32>
    %82 = arith.cmpf ogt, %80, %60 : vector<2x128xf32>
    %83 = arith.select %82, %80, %60 : vector<2x128xi1>, vector<2x128xf32>
    %84 = arith.select %82, %81, %61 : vector<2x128xi1>, vector<2x128xf32>
    %85 = arith.select %82, %60, %80 : vector<2x128xi1>, vector<2x128xf32>
    %86 = arith.select %82, %61, %81 : vector<2x128xi1>, vector<2x128xf32>
    %87 = arith.cmpf ogt, %85, %65 : vector<2x128xf32>
    %88 = arith.select %87, %85, %65 : vector<2x128xi1>, vector<2x128xf32>
    %89 = arith.select %87, %86, %66 : vector<2x128xi1>, vector<2x128xf32>
    %90 = arith.select %87, %65, %85 : vector<2x128xi1>, vector<2x128xf32>
    %91 = arith.select %87, %66, %86 : vector<2x128xi1>, vector<2x128xf32>
    %92 = arith.cmpf ogt, %90, %70 : vector<2x128xf32>
    %93 = arith.select %92, %90, %70 : vector<2x128xi1>, vector<2x128xf32>
    %94 = arith.select %92, %91, %71 : vector<2x128xi1>, vector<2x128xf32>
    %95 = vector.extract_strided_slice %13 {offsets = [0, 3, 0], sizes = [2, 1, 128], strides = [1, 1, 1]} : vector<2x8x128xf32> to vector<2x1x128xf32>
    %96 = vector.shape_cast %95 : vector<2x1x128xf32> to vector<2x128xf32>
    %cst_28 = arith.constant 3.000000e+00 : f32
    %97 = vector.broadcast %cst_28 : f32 to vector<2x128xf32>
    %98 = arith.cmpf ogt, %19, %97 : vector<2x128xf32>
    %99 = arith.addf %96, %16 : vector<2x128xf32>
    %cst_29 = arith.constant 0.000000e+00 : f32
    %100 = vector.broadcast %cst_29 : f32 to vector<2x128xf32>
    %101 = arith.maximumf %99, %100 : vector<2x128xf32>
    %cst_30 = arith.constant -1.000000e+00 : f32
    %102 = vector.broadcast %cst_30 : f32 to vector<2x128xf32>
    %103 = arith.select %98, %101, %102 : vector<2x128xi1>, vector<2x128xf32>
    %cst_31 = arith.constant 3.000000e+00 : f32
    %104 = vector.broadcast %cst_31 : f32 to vector<2x128xf32>
    %105 = arith.cmpf ogt, %103, %83 : vector<2x128xf32>
    %106 = arith.select %105, %103, %83 : vector<2x128xi1>, vector<2x128xf32>
    %107 = arith.select %105, %104, %84 : vector<2x128xi1>, vector<2x128xf32>
    %108 = arith.select %105, %83, %103 : vector<2x128xi1>, vector<2x128xf32>
    %109 = arith.select %105, %84, %104 : vector<2x128xi1>, vector<2x128xf32>
    %110 = arith.cmpf ogt, %108, %88 : vector<2x128xf32>
    %111 = arith.select %110, %108, %88 : vector<2x128xi1>, vector<2x128xf32>
    %112 = arith.select %110, %109, %89 : vector<2x128xi1>, vector<2x128xf32>
    %113 = arith.select %110, %88, %108 : vector<2x128xi1>, vector<2x128xf32>
    %114 = arith.select %110, %89, %109 : vector<2x128xi1>, vector<2x128xf32>
    %115 = arith.cmpf ogt, %113, %93 : vector<2x128xf32>
    %116 = arith.select %115, %113, %93 : vector<2x128xi1>, vector<2x128xf32>
    %117 = arith.select %115, %114, %94 : vector<2x128xi1>, vector<2x128xf32>
    %118 = vector.extract_strided_slice %13 {offsets = [0, 4, 0], sizes = [2, 1, 128], strides = [1, 1, 1]} : vector<2x8x128xf32> to vector<2x1x128xf32>
    %119 = vector.shape_cast %118 : vector<2x1x128xf32> to vector<2x128xf32>
    %cst_32 = arith.constant 4.000000e+00 : f32
    %120 = vector.broadcast %cst_32 : f32 to vector<2x128xf32>
    %121 = arith.cmpf ogt, %19, %120 : vector<2x128xf32>
    %122 = arith.addf %119, %16 : vector<2x128xf32>
    %cst_33 = arith.constant 0.000000e+00 : f32
    %123 = vector.broadcast %cst_33 : f32 to vector<2x128xf32>
    %124 = arith.maximumf %122, %123 : vector<2x128xf32>
    %cst_34 = arith.constant -1.000000e+00 : f32
    %125 = vector.broadcast %cst_34 : f32 to vector<2x128xf32>
    %126 = arith.select %121, %124, %125 : vector<2x128xi1>, vector<2x128xf32>
    %cst_35 = arith.constant 4.000000e+00 : f32
    %127 = vector.broadcast %cst_35 : f32 to vector<2x128xf32>
    %128 = arith.cmpf ogt, %126, %106 : vector<2x128xf32>
    %129 = arith.select %128, %126, %106 : vector<2x128xi1>, vector<2x128xf32>
    %130 = arith.select %128, %127, %107 : vector<2x128xi1>, vector<2x128xf32>
    %131 = arith.select %128, %106, %126 : vector<2x128xi1>, vector<2x128xf32>
    %132 = arith.select %128, %107, %127 : vector<2x128xi1>, vector<2x128xf32>
    %133 = arith.cmpf ogt, %131, %111 : vector<2x128xf32>
    %134 = arith.select %133, %131, %111 : vector<2x128xi1>, vector<2x128xf32>
    %135 = arith.select %133, %132, %112 : vector<2x128xi1>, vector<2x128xf32>
    %136 = arith.select %133, %111, %131 : vector<2x128xi1>, vector<2x128xf32>
    %137 = arith.select %133, %112, %132 : vector<2x128xi1>, vector<2x128xf32>
    %138 = arith.cmpf ogt, %136, %116 : vector<2x128xf32>
    %139 = arith.select %138, %136, %116 : vector<2x128xi1>, vector<2x128xf32>
    %140 = arith.select %138, %137, %117 : vector<2x128xi1>, vector<2x128xf32>
    %141 = vector.extract_strided_slice %13 {offsets = [0, 5, 0], sizes = [2, 1, 128], strides = [1, 1, 1]} : vector<2x8x128xf32> to vector<2x1x128xf32>
    %142 = vector.shape_cast %141 : vector<2x1x128xf32> to vector<2x128xf32>
    %cst_36 = arith.constant 5.000000e+00 : f32
    %143 = vector.broadcast %cst_36 : f32 to vector<2x128xf32>
    %144 = arith.cmpf ogt, %19, %143 : vector<2x128xf32>
    %145 = arith.addf %142, %16 : vector<2x128xf32>
    %cst_37 = arith.constant 0.000000e+00 : f32
    %146 = vector.broadcast %cst_37 : f32 to vector<2x128xf32>
    %147 = arith.maximumf %145, %146 : vector<2x128xf32>
    %cst_38 = arith.constant -1.000000e+00 : f32
    %148 = vector.broadcast %cst_38 : f32 to vector<2x128xf32>
    %149 = arith.select %144, %147, %148 : vector<2x128xi1>, vector<2x128xf32>
    %cst_39 = arith.constant 5.000000e+00 : f32
    %150 = vector.broadcast %cst_39 : f32 to vector<2x128xf32>
    %151 = arith.cmpf ogt, %149, %129 : vector<2x128xf32>
    %152 = arith.select %151, %149, %129 : vector<2x128xi1>, vector<2x128xf32>
    %153 = arith.select %151, %150, %130 : vector<2x128xi1>, vector<2x128xf32>
    %154 = arith.select %151, %129, %149 : vector<2x128xi1>, vector<2x128xf32>
    %155 = arith.select %151, %130, %150 : vector<2x128xi1>, vector<2x128xf32>
    %156 = arith.cmpf ogt, %154, %134 : vector<2x128xf32>
    %157 = arith.select %156, %154, %134 : vector<2x128xi1>, vector<2x128xf32>
    %158 = arith.select %156, %155, %135 : vector<2x128xi1>, vector<2x128xf32>
    %159 = arith.select %156, %134, %154 : vector<2x128xi1>, vector<2x128xf32>
    %160 = arith.select %156, %135, %155 : vector<2x128xi1>, vector<2x128xf32>
    %161 = arith.cmpf ogt, %159, %139 : vector<2x128xf32>
    %162 = arith.select %161, %159, %139 : vector<2x128xi1>, vector<2x128xf32>
    %163 = arith.select %161, %160, %140 : vector<2x128xi1>, vector<2x128xf32>
    %164 = vector.extract_strided_slice %13 {offsets = [0, 6, 0], sizes = [2, 1, 128], strides = [1, 1, 1]} : vector<2x8x128xf32> to vector<2x1x128xf32>
    %165 = vector.shape_cast %164 : vector<2x1x128xf32> to vector<2x128xf32>
    %cst_40 = arith.constant 6.000000e+00 : f32
    %166 = vector.broadcast %cst_40 : f32 to vector<2x128xf32>
    %167 = arith.cmpf ogt, %19, %166 : vector<2x128xf32>
    %168 = arith.addf %165, %16 : vector<2x128xf32>
    %cst_41 = arith.constant 0.000000e+00 : f32
    %169 = vector.broadcast %cst_41 : f32 to vector<2x128xf32>
    %170 = arith.maximumf %168, %169 : vector<2x128xf32>
    %cst_42 = arith.constant -1.000000e+00 : f32
    %171 = vector.broadcast %cst_42 : f32 to vector<2x128xf32>
    %172 = arith.select %167, %170, %171 : vector<2x128xi1>, vector<2x128xf32>
    %cst_43 = arith.constant 6.000000e+00 : f32
    %173 = vector.broadcast %cst_43 : f32 to vector<2x128xf32>
    %174 = arith.cmpf ogt, %172, %152 : vector<2x128xf32>
    %175 = arith.select %174, %172, %152 : vector<2x128xi1>, vector<2x128xf32>
    %176 = arith.select %174, %173, %153 : vector<2x128xi1>, vector<2x128xf32>
    %177 = arith.select %174, %152, %172 : vector<2x128xi1>, vector<2x128xf32>
    %178 = arith.select %174, %153, %173 : vector<2x128xi1>, vector<2x128xf32>
    %179 = arith.cmpf ogt, %177, %157 : vector<2x128xf32>
    %180 = arith.select %179, %177, %157 : vector<2x128xi1>, vector<2x128xf32>
    %181 = arith.select %179, %178, %158 : vector<2x128xi1>, vector<2x128xf32>
    %182 = arith.select %179, %157, %177 : vector<2x128xi1>, vector<2x128xf32>
    %183 = arith.select %179, %158, %178 : vector<2x128xi1>, vector<2x128xf32>
    %184 = arith.cmpf ogt, %182, %162 : vector<2x128xf32>
    %185 = arith.select %184, %182, %162 : vector<2x128xi1>, vector<2x128xf32>
    %186 = arith.select %184, %183, %163 : vector<2x128xi1>, vector<2x128xf32>
    %187 = arith.cmpf ogt, %176, %181 : vector<2x128xf32>
    %188 = arith.select %187, %180, %175 : vector<2x128xi1>, vector<2x128xf32>
    %189 = arith.select %187, %175, %180 : vector<2x128xi1>, vector<2x128xf32>
    %190 = arith.select %187, %181, %176 : vector<2x128xi1>, vector<2x128xf32>
    %191 = arith.select %187, %176, %181 : vector<2x128xi1>, vector<2x128xf32>
    %192 = arith.cmpf ogt, %191, %186 : vector<2x128xf32>
    %193 = arith.select %192, %185, %189 : vector<2x128xi1>, vector<2x128xf32>
    %194 = arith.select %192, %189, %185 : vector<2x128xi1>, vector<2x128xf32>
    %195 = arith.select %192, %186, %191 : vector<2x128xi1>, vector<2x128xf32>
    %196 = arith.cmpf ogt, %190, %195 : vector<2x128xf32>
    %197 = arith.select %196, %193, %188 : vector<2x128xi1>, vector<2x128xf32>
    %198 = arith.select %196, %188, %193 : vector<2x128xi1>, vector<2x128xf32>
    %c0_44 = arith.constant 0 : index
    %c0_45 = arith.constant 0 : index
    %199 = vector.load %arg5[%c0_44, %c0_45] : memref<2x384xf32, #tpu.memory_space<vmem>>, vector<2x128xf32>
    tpu.vector_store %arg5[%c0_44, %c0_45], %197 {strides = array<i32>} : memref<2x384xf32, #tpu.memory_space<vmem>>, vector<2x128xf32>,
    %c0_46 = arith.constant 0 : index
    %c128 = arith.constant 128 : index
    %200 = vector.load %arg5[%c0_46, %c128] : memref<2x384xf32, #tpu.memory_space<vmem>>, vector<2x128xf32>
    tpu.vector_store %arg5[%c0_46, %c128], %198 {strides = array<i32>} : memref<2x384xf32, #tpu.memory_space<vmem>>, vector<2x128xf32>,
    %c0_47 = arith.constant 0 : index
    %c256 = arith.constant 256 : index
    %201 = vector.load %arg5[%c0_47, %c256] : memref<2x384xf32, #tpu.memory_space<vmem>>, vector<2x128xf32>
    tpu.vector_store %arg5[%c0_47, %c256], %194 {strides = array<i32>} : memref<2x384xf32, #tpu.memory_space<vmem>>, vector<2x128xf32>,
    %cst_48 = arith.constant dense<0.000000e+00> : vector<128xf32>
    %202 = vector.multi_reduction <add>, %197, %cst_48 [0] : vector<2x128xf32> to vector<128xf32>
    %203 = vector.shape_cast %202 : vector<128xf32> to vector<1x128xf32>
    %cst_49 = arith.constant dense<0.000000e+00> : vector<128xf32>
    %204 = vector.multi_reduction <add>, %198, %cst_49 [0] : vector<2x128xf32> to vector<128xf32>
    %205 = vector.shape_cast %204 : vector<128xf32> to vector<1x128xf32>
    %cst_50 = arith.constant dense<0.000000e+00> : vector<128xf32>
    %206 = vector.multi_reduction <add>, %194, %cst_50 [0] : vector<2x128xf32> to vector<128xf32>
    %207 = vector.shape_cast %206 : vector<128xf32> to vector<1x128xf32>
    %208 = tpu.concatenate %203, %205, %207 in 1 : vector<1x128xf32>, vector<1x128xf32>, vector<1x128xf32> -> vector<1x384xf32>
    %209 = arith.mulf %197, %197 : vector<2x128xf32>
    %cst_51 = arith.constant dense<0.000000e+00> : vector<128xf32>
    %210 = vector.multi_reduction <add>, %209, %cst_51 [0] : vector<2x128xf32> to vector<128xf32>
    %211 = vector.shape_cast %210 : vector<128xf32> to vector<1x128xf32>
    %212 = arith.mulf %198, %198 : vector<2x128xf32>
    %cst_52 = arith.constant dense<0.000000e+00> : vector<128xf32>
    %213 = vector.multi_reduction <add>, %212, %cst_52 [0] : vector<2x128xf32> to vector<128xf32>
    %214 = vector.shape_cast %213 : vector<128xf32> to vector<1x128xf32>
    %215 = arith.mulf %194, %194 : vector<2x128xf32>
    %cst_53 = arith.constant dense<0.000000e+00> : vector<128xf32>
    %216 = vector.multi_reduction <add>, %215, %cst_53 [0] : vector<2x128xf32> to vector<128xf32>
    %217 = vector.shape_cast %216 : vector<128xf32> to vector<1x128xf32>
    %218 = tpu.concatenate %211, %214, %217 in 1 : vector<1x128xf32>, vector<1x128xf32>, vector<1x128xf32> -> vector<1x384xf32>
    %cst_54 = arith.constant 0.000000e+00 : f32
    %219 = vector.broadcast %cst_54 : f32 to vector<6x384xf32>
    %220 = tpu.concatenate %208, %218, %219 in 0 : vector<1x384xf32>, vector<1x384xf32>, vector<6x384xf32> -> vector<8x384xf32>
    %c0_55 = arith.constant 0 : index
    %c0_56 = arith.constant 0 : index
    %221 = vector.load %arg6[%c0_55, %c0_56] : memref<8x384xf32, #tpu.memory_space<vmem>>, vector<8x384xf32>
    tpu.vector_store %arg6[%c0_55, %c0_56], %220 {strides = array<i32>} : memref<8x384xf32, #tpu.memory_space<vmem>>, vector<8x384xf32>,
    return
  }
  func.func @transform_0(%arg0: i32) -> (i32, i32) {
    %c0_i32 = arith.constant 0 : i32
    %c0_i32_0 = arith.constant 0 : i32
    return %arg0, %c0_i32 : i32, i32
  }
  func.func @transform_1(%arg0: i32) -> (i32, i32) {
    %c0_i32 = arith.constant 0 : i32
    %c0_i32_0 = arith.constant 0 : i32
    %c0_i32_1 = arith.constant 0 : i32
    return %c0_i32, %c0_i32_0 : i32, i32
  }
  func.func @transform_2(%arg0: i32) -> (i32, i32) {
    %c0_i32 = arith.constant 0 : i32
    %c0_i32_0 = arith.constant 0 : i32
    %c0_i32_1 = arith.constant 0 : i32
    return %c0_i32, %c0_i32_0 : i32, i32
  }
  func.func @transform_3(%arg0: i32) -> (i32, i32) {
    %c0_i32 = arith.constant 0 : i32
    %c0_i32_0 = arith.constant 0 : i32
    %c0_i32_1 = arith.constant 0 : i32
    return %c0_i32, %c0_i32_0 : i32, i32
  }
  func.func @transform_4(%arg0: i32) -> (i32, i32) {
    %c0_i32 = arith.constant 0 : i32
    %c0_i32_0 = arith.constant 0 : i32
    return %arg0, %c0_i32 : i32, i32
  }
  func.func @transform_5(%arg0: i32) -> (i32, i32) {
    %c0_i32 = arith.constant 0 : i32
    %c0_i32_0 = arith.constant 0 : i32
    return %arg0, %c0_i32 : i32, i32
  }
}

</mosaic_0001>

<llo_original>
// kernel: tpu_custom_call.1
$region0: #{tpu_custom_call.1}
  #allocation0 [shape = 'u32[]', space=smem, size = 0x4, offset = 0x4, fixed_abs, tag = 'smem constant byte address 0x4 - core index']
  #allocation1 [shape = 'u32[144,128]{1,0:T(1,128)}', space=vmem, size = 0x12000, scoped, tag = 'internal scratch']
  %s0 = inlined_call_operand.hbm [shape: bf16[16,32], index: 0, kind: input, shape index: {}]
  %s1 = inlined_call_operand.hbm [shape: bf16[128,128], index: 1, kind: input, shape index: {}]
  %s2 = inlined_call_operand.vmem [shape: f32[1,128], index: 2, kind: input, shape index: {}]
  %s3 = inlined_call_operand.vmem [shape: f32[1,128], index: 3, kind: input, shape index: {}]
  %s4 = inlined_call_operand.hbm [shape: f32[2,384], index: 4, kind: output, shape index: {0}]
  %s5 = inlined_call_operand.hbm [shape: f32[8,384], index: 5, kind: output, shape index: {1}]
  %6 = xla_tuple %s4, %s5
  %s7 = sld [smem:[#allocation0]]
  $region42: #{tpu_custom_call.1} parent=0
    _
  %s9 = ssub.s32 1, %s7
  %s10 = scalar_select 0, %s9, %s7
  $region1: #{tpu_custom_call.1} parent=0
    #allocation2 [shape = 'u8[4096]{0}', space=vmem, size = 0x1000, scoped, tag = 'input window, operand 0, single buffered']
    #allocation3 [shape = 's32[1]{0}', space=sflag, size = 0x4, scoped, tag = 'scoped memory for tpu_custom_call.1']
    #allocation4 [shape = 's32[1]{0}', space=sflag, size = 0x4, scoped, tag = 'scoped memory for tpu_custom_call.1']
    #allocation5 [shape = 'u8[32768]{0}', space=vmem, size = 0x8000, scoped, tag = 'input window, operand 1, single buffered']
    #allocation6 [shape = 's32[1]{0}', space=sflag, size = 0x4, scoped, tag = 'scoped memory for tpu_custom_call.1']
    #allocation7 [shape = 'u8[3072]{0}', space=vmem, size = 0xc00, scoped, tag = 'output window, operand 0, single buffered']
    #allocation8 [shape = 'u8[12288]{0}', space=vmem, size = 0x3000, scoped, tag = 'output window, operand 1, single buffered']
    #allocation9 [shape = 's32[1]{0}', space=sflag, size = 0x4, scoped, tag = 'scoped memory for tpu_custom_call.1']
    %11 = vsyncpa [#allocation3], 0
    %12 = vsyncpa [#allocation6], 0
    %13 = vsyncpa [#allocation4], 0
    %14 = vsyncpa [#allocation9], 0
    // Predicated region
    $region2: #{tpu_custom_call.1} parent=1 // pred_check
      _
    $region3: #{tpu_custom_call.1} parent=1 // pred_check_branch
      %16 = sbr.rel (0) target = $region5
    $region4: #{tpu_custom_call.1} parent=1 // pred_region
      %s18 = ssub.s32 128, 128
      %19 = vsyncadd [#allocation3], %s18
      %s20 = sshll.u32 [#allocation2], 4
      %s21 = int_to_ptr.vmem [resolvable:$true] %s20
      %26 = dma.hbm_to_vmem [thread:$0]  %s0, 128, %s21, [#allocation3], 64, 64, 4
    $region5: #{tpu_custom_call.1} parent=1 // pred_fallthru
      _
    // Predicated region
    $region6: #{tpu_custom_call.1} parent=1 // pred_check
      _
    $region7: #{tpu_custom_call.1} parent=1 // pred_check_branch
      %28 = sbr.rel (0) target = $region9
    $region8: #{tpu_custom_call.1} parent=1 // pred_region
      %s30 = ssub.s32 1024, 1024
      %31 = vsyncadd [#allocation6], %s30
      %s32 = sshll.u32 [#allocation5], 4
      %s33 = int_to_ptr.vmem [resolvable:$true] %s32
      %38 = dma.hbm_to_vmem [thread:$0]  %s1, 1024, %s33, [#allocation6], 64, 64, 4
    $region9: #{tpu_custom_call.1} parent=1 // pred_fallthru
      _
    // Predicated region
    $region10: #{tpu_custom_call.1} parent=1 // pred_check
      _
    $region11: #{tpu_custom_call.1} parent=1 // pred_check_branch
      %40 = sbr.rel (0) target = $region13
    $region12: #{tpu_custom_call.1} parent=1 // pred_region
      _
    $region13: #{tpu_custom_call.1} parent=1 // pred_fallthru
      _
    // Predicated region
    $region14: #{tpu_custom_call.1} parent=1 // pred_check
      _
    $region15: #{tpu_custom_call.1} parent=1 // pred_check_branch
      %42 = sbr.rel (0) target = $region17
    $region16: #{tpu_custom_call.1} parent=1 // pred_region
      _
    $region17: #{tpu_custom_call.1} parent=1 // pred_fallthru
      _
    // Predicated region
    $region18: #{tpu_custom_call.1} parent=1 // pred_check
      _
    $region19: #{tpu_custom_call.1} parent=1 // pred_check_branch
      %44 = sbr.rel (0) target = $region21
    $region20: #{tpu_custom_call.1} parent=1 // pred_region
      %45 = dma.done [#allocation3], 128
    $region21: #{tpu_custom_call.1} parent=1 // pred_fallthru
      _
    // Predicated region
    $region22: #{tpu_custom_call.1} parent=1 // pred_check
      _
    $region23: #{tpu_custom_call.1} parent=1 // pred_check_branch
      %47 = sbr.rel (0) target = $region25
    $region24: #{tpu_custom_call.1} parent=1 // pred_region
      %48 = dma.done [#allocation6], 1024
    $region25: #{tpu_custom_call.1} parent=1 // pred_fallthru
      _
    %v50 = vld [vmem:[#allocation2] sm:$0xf]
    %v51 = vld [vmem:[#allocation2 + $0x4] sm:$0xf]
    %v54 = vunpack.c.l.b16 %v50
    %v55 = vunpack.c.l.b16 %v51
    %v56 = vpack.c.b16 %v55, %v54
    %v58 = vshrl.u32 %v56, 16
    %v60 = vshll.u32 %v56, 16
    %v62 = vrot.slane %v60, 1
    %v63 = vor.u32 %v58, %v62
    %vm65 = vcmask 1047552
    %vm66 = vsmask.f32 7424
    %vm67 = vmand %vm65, %vm66
    %v68 = vsel %vm67, %v63, 0
    %v69 = vrot.slane %v56, 1
    %vm70 = vcmask 1046528
    %v73 = vsel %vm70, %v69, 0
    %v74 = vrot.slane %v58, 1
    %v75 = vrot.slane %v60, 2
    %v76 = vor.u32 %v74, %v75
    %vm78 = vcmask 1046528
    %vm79 = vsmask.f32 6400
    %vm80 = vmand %vm78, %vm79
    %v81 = vsel %vm80, %v76, 0
    %83 = vrot.lane.b32.xlu0 %v68, 32
    %v84 = vpop.permute.xlu0 %83
    %86 = vrot.lane.b32.xlu0 %v73, 64
    %v87 = vpop.permute.xlu0 %86
    %89 = vrot.lane.b32.xlu0 %v81, 96
    %v90 = vpop.permute.xlu0 %89
    %vm91 = vcmask 261120
    %v93 = vsel %vm91, %v56, %v84
    %vm94 = vcmask 523264
    %v96 = vsel %vm94, %v93, %v87
    %vm97 = vcmask 785408
    %v99 = vsel %vm97, %v96, %v90
    %v101 = vld [vmem:[#allocation5] sm:$0xf]
    %v102 = vld [vmem:[#allocation5 + $0x4] sm:$0xf]
    %v103 = vld [vmem:[#allocation5 + $0x8] sm:$0xf]
    %v104 = vld [vmem:[#allocation5 + $0xc] sm:$0xf]
    %v105 = vld [vmem:[#allocation5 + $0x10] sm:$0xf]
    %v106 = vld [vmem:[#allocation5 + $0x14] sm:$0xf]
    %v107 = vld [vmem:[#allocation5 + $0x18] sm:$0xf]
    %v108 = vld [vmem:[#allocation5 + $0x1c] sm:$0xf]
    %v109 = vld [vmem:[#allocation5 + $0x20] sm:$0xf]
    %v110 = vld [vmem:[#allocation5 + $0x24] sm:$0xf]
    %v111 = vld [vmem:[#allocation5 + $0x28] sm:$0xf]
    %v112 = vld [vmem:[#allocation5 + $0x2c] sm:$0xf]
    %v113 = vld [vmem:[#allocation5 + $0x30] sm:$0xf]
    %v114 = vld [vmem:[#allocation5 + $0x34] sm:$0xf]
    %v115 = vld [vmem:[#allocation5 + $0x38] sm:$0xf]
    %v116 = vld [vmem:[#allocation5 + $0x3c] sm:$0xf]
    %v133 = vunpack.c.l.b16 %v101
    %v134 = vunpack.c.l.b16 %v102
    %v135 = vunpack.c.l.b16 %v103
    %v136 = vunpack.c.l.b16 %v104
    %v137 = vunpack.c.l.b16 %v105
    %v138 = vunpack.c.l.b16 %v106
    %v139 = vunpack.c.l.b16 %v107
    %v140 = vunpack.c.l.b16 %v108
    %v141 = vunpack.c.l.b16 %v109
    %v142 = vunpack.c.l.b16 %v110
    %v143 = vunpack.c.l.b16 %v111
    %v144 = vunpack.c.l.b16 %v112
    %v145 = vunpack.c.l.b16 %v113
    %v146 = vunpack.c.l.b16 %v114
    %v147 = vunpack.c.l.b16 %v115
    %v148 = vunpack.c.l.b16 %v116
    %v149 = vpack.c.b16 %v134, %v133
    %v150 = vpack.c.b16 %v136, %v135
    %v151 = vpack.c.b16 %v138, %v137
    %v152 = vpack.c.b16 %v140, %v139
    %v153 = vpack.c.b16 %v142, %v141
    %v154 = vpack.c.b16 %v144, %v143
    %v155 = vpack.c.b16 %v146, %v145
    %v156 = vpack.c.b16 %v148, %v147
    %165 = vmatprep.subr.bf16.mxu0 0
    %166 = vmatpush1.bf16.msra.mxu0 %v156
    %167 = vmatprep.subr.bf16.mxu0 0
    %168 = vmatpush1.bf16.msra.mxu0 %v155
    %169 = vmatprep.subr.bf16.mxu0 0
    %170 = vmatpush1.bf16.msra.mxu0 %v154
    %171 = vmatprep.subr.bf16.mxu0 0
    %172 = vmatpush1.bf16.msra.mxu0 %v153
    %173 = vmatprep.subr.bf16.mxu0 0
    %174 = vmatpush1.bf16.msra.mxu0 %v152
    %175 = vmatprep.subr.bf16.mxu0 0
    %176 = vmatpush1.bf16.msra.mxu0 %v151
    %177 = vmatprep.subr.bf16.mxu0 0
    %178 = vmatpush1.bf16.msra.mxu0 %v150
    %179 = vmatprep.subr.bf16.mxu0 0
    %180 = vmatpush1.bf16.msra.mxu0 %v149
    %181 = vmatprep.subr.bf16.mxu0 0
    %182 = vmatpush2.bf16.msra.mxu0 0
    %183 = vmatprep.subr.bf16.mxu0 0
    %184 = vmatpush2.bf16.msra.mxu0 0
    %185 = vmatprep.subr.bf16.mxu0 0
    %186 = vmatpush2.bf16.msra.mxu0 0
    %187 = vmatprep.subr.bf16.mxu0 0
    %188 = vmatpush2.bf16.msra.mxu0 0
    %189 = vmatprep.subr.bf16.mxu0 0
    %190 = vmatpush2.bf16.msra.mxu0 0
    %191 = vmatprep.subr.bf16.mxu0 0
    %192 = vmatpush2.bf16.msra.mxu0 0
    %193 = vmatprep.subr.bf16.mxu0 0
    %194 = vmatpush2.bf16.msra.mxu0 0
    %195 = vmatprep.subr.bf16.mxu0 0
    %196 = vmatpush2.bf16.msra.mxu0 0
    %197 = vmatprep.mubr.bf16.mxu0 0
    %198 = vmatmul.mubr.bf16.gmra.mxu0 %v99
    %v199 = vpop.f32.mrf.mxu0
    %v200 = vadd.f32 0.0, %v199
    %v201 = vpop.f32.mrf.mxu0
    %v202 = vpop.f32.mrf.mxu0
    %v203 = vadd.f32 0.0, %v202
    %v204 = vpop.f32.mrf.mxu0
    %205 = vdwg.mxu0
    %v206 = vld [vmem:[%s2] sm:$0x1]
    %v208 = vlaneseq
    %v209 = vshrl.u32 %v208, 7
    %v210 = vsub.s32 0, %v209
    %v211 = vrot.slane %v206, %v210
    %v213 = vld [vmem:[%s3] sm:$0x1]
    %v215 = vlaneseq
    %v216 = vshrl.u32 %v215, 7
    %v217 = vsub.s32 0, %v216
    %v218 = vrot.slane %v213, %v217
    %vm220 = vcmp.gt.f32.partialorder %v218, 0.0
    %v221 = vadd.f32 %v200, %v211
    %v222 = vadd.f32 %v203, %v211
    %v223 = vmax.f32 %v221, 0.0
    %v224 = vmax.f32 %v222, 0.0
    %v227 = vrot.slane %v224, 7
    %vm228 = vcmask 1041409
    %v229 = vsel %vm228, %v227, %v223
    %v231 = vsel %vm220, %v229, -1.0
    %vm232 = vcmp.gt.f32.partialorder %v231, -1.0
    %v233 = vsel %vm232, %v231, -1.0
    %v234 = vsel %vm232, 0.0, 8.0
    %v235 = vsel %vm232, -1.0, %v231
    %v236 = vsel %vm232, 8.0, 0.0
    %vm237 = vcmp.gt.f32.partialorder %v235, -1.0
    %v238 = vsel %vm237, %v235, -1.0
    %v239 = vsel %vm237, %v236, 8.0
    %v240 = vsel %vm237, -1.0, %v235
    %v241 = vsel %vm237, 8.0, %v236
    %vm242 = vcmp.gt.f32.partialorder %v240, -1.0
    %v243 = vsel %vm242, %v240, -1.0
    %v244 = vsel %vm242, %v241, 8.0
    %vm245 = vcmp.gt.f32.partialorder %v218, 1.0
    %v246 = vrot.slane %v223, 1
    %v247 = vsel %vm228, %v224, %v246
    %v249 = vsel %vm245, %v247, -1.0
    %vm250 = vcmp.gt.f32.partialorder %v249, %v233
    %v251 = vsel %vm250, %v249, %v233
    %v252 = vsel %vm250, 1.0, %v234
    %v253 = vsel %vm250, %v233, %v249
    %v254 = vsel %vm250, %v234, 1.0
    %vm255 = vcmp.gt.f32.partialorder %v253, %v238
    %v256 = vsel %vm255, %v253, %v238
    %v257 = vsel %vm255, %v254, %v239
    %v258 = vsel %vm255, %v238, %v253
    %v259 = vsel %vm255, %v239, %v254
    %vm260 = vcmp.gt.f32.partialorder %v258, %v243
    %v261 = vsel %vm260, %v258, %v243
    %v262 = vsel %vm260, %v259, %v244
    %vm263 = vcmp.gt.f32.partialorder %v218, 2.0
    %v264 = vrot.slane %v223, 2
    %v265 = vrot.slane %v224, 1
    %v266 = vsel %vm228, %v265, %v264
    %v268 = vsel %vm263, %v266, -1.0
    %vm269 = vcmp.gt.f32.partialorder %v268, %v251
    %v270 = vsel %vm269, %v268, %v251
    %v271 = vsel %vm269, 2.0, %v252
    %v272 = vsel %vm269, %v251, %v268
    %v273 = vsel %vm269, %v252, 2.0
    %vm274 = vcmp.gt.f32.partialorder %v272, %v256
    %v275 = vsel %vm274, %v272, %v256
    %v276 = vsel %vm274, %v273, %v257
    %v277 = vsel %vm274, %v256, %v272
    %v278 = vsel %vm274, %v257, %v273
    %vm279 = vcmp.gt.f32.partialorder %v277, %v261
    %v280 = vsel %vm279, %v277, %v261
    %v281 = vsel %vm279, %v278, %v262
    %vm282 = vcmp.gt.f32.partialorder %v218, 3.0
    %v283 = vrot.slane %v223, 3
    %v284 = vrot.slane %v224, 2
    %v285 = vsel %vm228, %v284, %v283
    %v287 = vsel %vm282, %v285, -1.0
    %vm288 = vcmp.gt.f32.partialorder %v287, %v270
    %v289 = vsel %vm288, %v287, %v270
    %v290 = vsel %vm288, 3.0, %v271
    %v291 = vsel %vm288, %v270, %v287
    %v292 = vsel %vm288, %v271, 3.0
    %vm293 = vcmp.gt.f32.partialorder %v291, %v275
    %v294 = vsel %vm293, %v291, %v275
    %v295 = vsel %vm293, %v292, %v276
    %v296 = vsel %vm293, %v275, %v291
    %v297 = vsel %vm293, %v276, %v292
    %vm298 = vcmp.gt.f32.partialorder %v296, %v280
    %v299 = vsel %vm298, %v296, %v280
    %v300 = vsel %vm298, %v297, %v281
    %vm301 = vcmp.gt.f32.partialorder %v218, 4.0
    %v302 = vrot.slane %v223, 4
    %v303 = vrot.slane %v224, 3
    %v304 = vsel %vm228, %v303, %v302
    %v306 = vsel %vm301, %v304, -1.0
    %vm307 = vcmp.gt.f32.partialorder %v306, %v289
    %v308 = vsel %vm307, %v306, %v289
    %v309 = vsel %vm307, 4.0, %v290
    %v310 = vsel %vm307, %v289, %v306
    %v311 = vsel %vm307, %v290, 4.0
    %vm312 = vcmp.gt.f32.partialorder %v310, %v294
    %v313 = vsel %vm312, %v310, %v294
    %v314 = vsel %vm312, %v311, %v295
    %v315 = vsel %vm312, %v294, %v310
    %v316 = vsel %vm312, %v295, %v311
    %vm317 = vcmp.gt.f32.partialorder %v315, %v299
    %v318 = vsel %vm317, %v315, %v299
    %v319 = vsel %vm317, %v316, %v300
    %vm320 = vcmp.gt.f32.partialorder %v218, 5.0
    %v321 = vrot.slane %v223, 5
    %v322 = vrot.slane %v224, 4
    %v323 = vsel %vm228, %v322, %v321
    %v325 = vsel %vm320, %v323, -1.0
    %vm326 = vcmp.gt.f32.partialorder %v325, %v308
    %v327 = vsel %vm326, %v325, %v308
    %v328 = vsel %vm326, 5.0, %v309
    %v329 = vsel %vm326, %v308, %v325
    %v330 = vsel %vm326, %v309, 5.0
    %vm331 = vcmp.gt.f32.partialorder %v329, %v313
    %v332 = vsel %vm331, %v329, %v313
    %v333 = vsel %vm331, %v330, %v314
    %v334 = vsel %vm331, %v313, %v329
    %v335 = vsel %vm331, %v314, %v330
    %vm336 = vcmp.gt.f32.partialorder %v334, %v318
    %v337 = vsel %vm336, %v334, %v318
    %v338 = vsel %vm336, %v335, %v319
    %vm339 = vcmp.gt.f32.partialorder %v218, 6.0
    %v340 = vrot.slane %v223, 6
    %v341 = vrot.slane %v224, 5
    %v342 = vsel %vm228, %v341, %v340
    %v344 = vsel %vm339, %v342, -1.0
    %vm345 = vcmp.gt.f32.partialorder %v344, %v327
    %v346 = vsel %vm345, %v344, %v327
    %v347 = vsel %vm345, 6.0, %v328
    %v348 = vsel %vm345, %v327, %v344
    %v349 = vsel %vm345, %v328, 6.0
    %vm350 = vcmp.gt.f32.partialorder %v348, %v332
    %v351 = vsel %vm350, %v348, %v332
    %v352 = vsel %vm350, %v349, %v333
    %v353 = vsel %vm350, %v332, %v348
    %v354 = vsel %vm350, %v333, %v349
    %vm355 = vcmp.gt.f32.partialorder %v353, %v337
    %v356 = vsel %vm355, %v353, %v337
    %v357 = vsel %vm355, %v354, %v338
    %vm358 = vcmp.gt.f32.partialorder %v347, %v352
    %v359 = vsel %vm358, %v351, %v346
    %v360 = vsel %vm358, %v346, %v351
    %v361 = vsel %vm358, %v352, %v347
    %v362 = vsel %vm358, %v347, %v352
    %vm363 = vcmp.gt.f32.partialorder %v362, %v357
    %v364 = vsel %vm363, %v356, %v360
    %v365 = vsel %vm363, %v360, %v356
    %v366 = vsel %vm363, %v357, %v362
    %vm367 = vcmp.gt.f32.partialorder %v361, %v366
    %v368 = vsel %vm367, %v364, %v359
    %v369 = vsel %vm367, %v359, %v364
    %370 = vst [vmem:[#allocation7] sm:$0x3] %v368
    %371 = vst [vmem:[#allocation7 + $0x2] sm:$0x3] %v369
    %372 = vst [vmem:[#allocation7 + $0x4] sm:$0x3] %v365
    %vm373 = vcmask 1041408
    %v374 = vsel %vm373, %v368, 0.0
    %v375 = vrot.slane %v374, 4
    %v376 = vadd.f32 %v374, %v375
    %v377 = vrot.slane %v376, 2
    %v378 = vadd.f32 %v376, %v377
    %v379 = vrot.slane %v378, 1
    %v380 = vadd.f32 %v378, %v379
    %v381 = vsel %vm373, %v369, 0.0
    %v382 = vrot.slane %v381, 4
    %v383 = vadd.f32 %v381, %v382
    %v384 = vrot.slane %v383, 2
    %v385 = vadd.f32 %v383, %v384
    %v386 = vrot.slane %v385, 1
    %v387 = vadd.f32 %v385, %v386
    %v388 = vsel %vm373, %v365, 0.0
    %v389 = vrot.slane %v388, 4
    %v390 = vadd.f32 %v388, %v389
    %v391 = vrot.slane %v390, 2
    %v392 = vadd.f32 %v390, %v391
    %v393 = vrot.slane %v392, 1
    %v394 = vadd.f32 %v392, %v393
    %v395 = vmul.f32 %v368, %v368
    %v396 = vsel %vm373, %v395, 0.0
    %v397 = vrot.slane %v396, 4
    %v398 = vadd.f32 %v396, %v397
    %v399 = vrot.slane %v398, 2
    %v400 = vadd.f32 %v398, %v399
    %v401 = vrot.slane %v400, 1
    %v402 = vadd.f32 %v400, %v401
    %v403 = vmul.f32 %v369, %v369
    %v404 = vsel %vm373, %v403, 0.0
    %v405 = vrot.slane %v404, 4
    %v406 = vadd.f32 %v404, %v405
    %v407 = vrot.slane %v406, 2
    %v408 = vadd.f32 %v406, %v407
    %v409 = vrot.slane %v408, 1
    %v410 = vadd.f32 %v408, %v409
    %v411 = vmul.f32 %v365, %v365
    %v412 = vsel %vm373, %v411, 0.0
    %v413 = vrot.slane %v412, 4
    %v414 = vadd.f32 %v412, %v413
    %v415 = vrot.slane %v414, 2
    %v416 = vadd.f32 %v414, %v415
    %v417 = vrot.slane %v416, 1
    %v418 = vadd.f32 %v416, %v417
    %v422 = vrot.slane %v402, 7
    %v423 = vrot.slane %v410, 7
    %v424 = vrot.slane %v418, 7
    %vm428 = vcmask 1040384
    %v429 = vsel %vm428, %v380, %v422
    %v430 = vsel %vm428, %v387, %v423
    %v431 = vsel %vm428, %v394, %v424
    %v432 = vsel %vm373, %v429, 0.0
    %v433 = vsel %vm373, %v430, 0.0
    %v434 = vsel %vm373, %v431, 0.0
    %435 = vst [vmem:[#allocation8] sm:$0xff] %v432
    %436 = vst [vmem:[#allocation8 + $0x8] sm:$0xff] %v433
    %437 = vst [vmem:[#allocation8 + $0x10] sm:$0xff] %v434
    // Predicated region
    $region26: #{tpu_custom_call.1} parent=1 // pred_check
      _
    $region27: #{tpu_custom_call.1} parent=1 // pred_check_branch
      %439 = sbr.rel (0) target = $region29
    $region28: #{tpu_custom_call.1} parent=1 // pred_region
      %s441 = ssub.s32 96, 96
      %442 = vsyncadd [#allocation4], %s441
      %s444 = sshll.u32 [#allocation7], 4
      %s445 = int_to_ptr.vmem [resolvable:$true] %s444
      %447 = dma.vmem_to_hbm [thread:$0]  %s445, 96, %s4, [#allocation4]
    $region29: #{tpu_custom_call.1} parent=1 // pred_fallthru
      _
    // Predicated region
    $region30: #{tpu_custom_call.1} parent=1 // pred_check
      _
    $region31: #{tpu_custom_call.1} parent=1 // pred_check_branch
      %449 = sbr.rel (0) target = $region33
    $region32: #{tpu_custom_call.1} parent=1 // pred_region
      %s451 = ssub.s32 384, 384
      %452 = vsyncadd [#allocation9], %s451
      %s454 = sshll.u32 [#allocation8], 4
      %s455 = int_to_ptr.vmem [resolvable:$true] %s454
      %457 = dma.vmem_to_hbm [thread:$0]  %s455, 384, %s5, [#allocation9]
    $region33: #{tpu_custom_call.1} parent=1 // pred_fallthru
      _
    // Predicated region
    $region34: #{tpu_custom_call.1} parent=1 // pred_check
      _
    $region35: #{tpu_custom_call.1} parent=1 // pred_check_branch
      %459 = sbr.rel (0) target = $region37
    $region36: #{tpu_custom_call.1} parent=1 // pred_region
      %460 = dma.done [#allocation4], 96
    $region37: #{tpu_custom_call.1} parent=1 // pred_fallthru
      _
    // Predicated region
    $region38: #{tpu_custom_call.1} parent=1 // pred_check
      _
    $region39: #{tpu_custom_call.1} parent=1 // pred_check_branch
      %462 = sbr.rel (0) target = $region41
    $region40: #{tpu_custom_call.1} parent=1 // pred_region
      %463 = dma.done [#allocation9], 384
    $region41: #{tpu_custom_call.1} parent=1 // pred_fallthru
      _
    %464 = vsyncpa [#allocation3], 1
    %465 = vsyncpa [#allocation6], 1
    %466 = vsyncpa [#allocation4], 1
    %467 = vsyncpa [#allocation9], 1

</llo_original>
